<compile_context>
chip_gen: v5e
topology: v5e:2x2
jax: 0.10.0
libtpu: 0.0.40
codegen_flags: <defaults>
</compile_context>

<pallas_src>
import string

import jax
import jax.numpy as jnp
from jax import lax
from jax.experimental import pallas as pl
from jax.experimental.pallas import tpu as pltpu

all_letters = string.ascii_letters + " .,;'"
n_letters = len(all_letters)          # 57
n_hidden = 128
n_categories = 18                     # classic tutorial: 18 language classes

N_LET_PAD = 64                        # letter rows padded up (gather table)
O_PAD = 128                           # categories padded to a full lane tile
N_COL = n_hidden + O_PAD              # fused x-table width: [hidden | logits]
NEG_BIG = -1e30                       # "minus inf" bias for padded logit lanes


def letter_to_index(letter):
    return all_letters.find(letter)


def line_to_indices(line):
    """Host-side validation: unknown chars would be an unchecked OOB gather."""
    idx = []
    for c in line:
        i = all_letters.find(c)
        if i < 0:
            raise ValueError(f"character {c!r} not in the RNN vocabulary")
        idx.append(i)
    return jnp.array(idx, dtype=jnp.int32)


# ---------------------------------------------------------------------------
# Pallas kernel: whole recurrence in one invocation, hidden carried in vregs,
# logits matmul + log-softmax only after the loop.
# ---------------------------------------------------------------------------
def _rnn_seq_kernel(idx_ref, w_x_ref, w_hh_ref, w_ho_ref, out_ref, hid_ref):
    seq_len = idx_ref.shape[0]                      # static (SMEM array shape)
    w_hh = w_hh_ref[...]                            # (128, 128), loaded once

    def step(t, h):
        # x-row gather (bias already folded into the table row).
        x_row = w_x_ref[idx_ref[t]]                 # (1, N_COL)
        return (jnp.dot(h, w_hh, preferred_element_type=jnp.float32)
                + x_row[:, :n_hidden])              # (1, n_hidden)

    # Recurrence over all but the last character; hidden stays in registers.
    h_prev = lax.fori_loop(0, seq_len - 1, step,
                           jnp.zeros((1, n_hidden), jnp.float32),
                           unroll=True)

    # Final step: both hidden' and logits are built from the same combined
    # vector [x_last, h_prev] (exactly the PyTorch semantics).
    last_row = w_x_ref[idx_ref[seq_len - 1]]        # (1, N_COL)
    hid_ref[...] = (jnp.dot(h_prev, w_hh, preferred_element_type=jnp.float32)
                    + last_row[:, :n_hidden])

    logits = (jnp.dot(h_prev, w_ho_ref[...], preferred_element_type=jnp.float32)
              + last_row[:, n_hidden:])             # (1, O_PAD), pads ~ -1e30
    m = jnp.max(logits, axis=-1, keepdims=True)
    shifted = logits - m
    lse = jnp.log(jnp.sum(jnp.exp(shifted), axis=-1, keepdims=True))
    out_ref[...] = shifted - lse                    # lane-dense (1, 128) store


# ---------------------------------------------------------------------------
# Parameter packing: PyTorch layout -> fused / padded kernel layout.
# ---------------------------------------------------------------------------
def pack_params(w_i2h, b_i2h, w_i2o, b_i2o):
    """w_*: (in_features, out_features) = transpose of nn.Linear.weight."""
    w_i2o_p = jnp.pad(w_i2o, ((0, 0), (0, O_PAD - n_categories)))
    b_i2o_p = jnp.pad(b_i2o, ((0, 0), (0, O_PAD - n_categories)),
                      constant_values=NEG_BIG)
    w_full = jnp.concatenate([w_i2h, w_i2o_p], axis=1)          # (C, N_COL)
    b_full = jnp.concatenate([b_i2h, b_i2o_p], axis=1)          # (1, N_COL)

    # Per-letter gather table with biases folded in (one row selected/step).
    x_rows = w_full[:n_letters] + b_full                        # (57, N_COL)
    w_x = jnp.pad(x_rows, ((0, N_LET_PAD - n_letters), (0, 0)))
    w_x = w_x.reshape(N_LET_PAD, 1, N_COL)   # leading-dim dynamic gather, cheap

    # Hidden-input weights, split so the logits matmul runs only once.
    w_hh = w_i2h[n_letters:]                                    # (128, 128)
    w_ho = w_i2o_p[n_letters:]                                  # (128, 128)
    return w_x, w_hh, w_ho


@jax.jit
def _rnn_sequence_impl(letter_idx, w_x, w_hh, w_ho):
    grid_spec = pltpu.PrefetchScalarGridSpec(
        num_scalar_prefetch=1,
        grid=(1,),
        in_specs=[
            pl.BlockSpec((N_LET_PAD, 1, N_COL), lambda i, idx: (0, 0, 0)),
            pl.BlockSpec((n_hidden, n_hidden), lambda i, idx: (0, 0)),
            pl.BlockSpec((n_hidden, O_PAD), lambda i, idx: (0, 0)),
        ],
        out_specs=(
            pl.BlockSpec((1, O_PAD), lambda i, idx: (0, 0)),
            pl.BlockSpec((1, n_hidden), lambda i, idx: (0, 0)),
        ),
    )
    out_pad, hid = pl.pallas_call(
        _rnn_seq_kernel,
        grid_spec=grid_spec,
        out_shape=(
            jax.ShapeDtypeStruct((1, O_PAD), jnp.float32),
            jax.ShapeDtypeStruct((1, n_hidden), jnp.float32),
        ),
        compiler_params=pltpu.CompilerParams(
            dimension_semantics=("arbitrary",)),
    )(letter_idx, w_x, w_hh, w_ho)
    return out_pad[:, :n_categories], hid


def rnn_sequence(letter_idx, w_x, w_hh, w_ho):
    """Run a whole name through the RNN.

    Returns (log_softmax_output (1, n_categories), final_hidden (1, n_hidden)).
    """
    if letter_idx.shape[0] == 0:
        raise ValueError("empty name: need at least one character")
    return _rnn_sequence_impl(letter_idx, w_x, w_hh, w_ho)


# ---------------------------------------------------------------------------
# Pure-JAX per-step reference (mirrors the PyTorch module exactly).
# ---------------------------------------------------------------------------
def rnn_cell_ref(inp, hidden, w_i2h, b_i2h, w_i2o, b_i2o):
    combined = jnp.concatenate([inp, hidden], axis=1)
    new_hidden = combined @ w_i2h + b_i2h
    logits = combined @ w_i2o + b_i2o
    return jax.nn.log_softmax(logits, axis=1), new_hidden


if __name__ == "__main__":
    key = jax.random.PRNGKey(0)
    k1, k2, k3, k4 = jax.random.split(key, 4)

    combined_size = n_letters + n_hidden
    bound = 1.0 / jnp.sqrt(jnp.float32(combined_size))
    w_i2h = jax.random.uniform(k1, (combined_size, n_hidden),
                               jnp.float32, -bound, bound)
    b_i2h = jax.random.uniform(k2, (1, n_hidden), jnp.float32, -bound, bound)
    w_i2o = jax.random.uniform(k3, (combined_size, n_categories),
                               jnp.float32, -bound, bound)
    b_i2o = jax.random.uniform(k4, (1, n_categories), jnp.float32, -bound, bound)

    w_x, w_hh, w_ho = pack_params(w_i2h, b_i2h, w_i2o, b_i2o)

    line = "Albert"
    letter_idx = line_to_indices(line)                 # (6,) int32

    out, hidden = rnn_sequence(letter_idx, w_x, w_hh, w_ho)
    out = jax.block_until_ready(out)
    hidden = jax.block_until_ready(hidden)

    # Reference: step character-by-character like the PyTorch tutorial loop.
    h_ref = jnp.zeros((1, n_hidden), jnp.float32)
    out_ref = None
    for c in line:
        x = jnp.zeros((1, n_letters), jnp.float32)
        x = x.at[0, letter_to_index(c)].set(1.0)
        out_ref, h_ref = rnn_cell_ref(x, h_ref, w_i2h, b_i2h, w_i2o, b_i2o)

    assert out.shape == (1, n_categories)
    assert hidden.shape == (1, n_hidden)
    assert jnp.allclose(out, out_ref, atol=1e-4), "log-softmax output mismatch"
    assert jnp.allclose(hidden, h_ref, atol=1e-4), "hidden state mismatch"

    print("KERNEL_OK")
</pallas_src>

<mosaic_0001>
module attributes {stable_mosaic.version = 11 : i64} {
  func.func @_rnn_seq_kernel(%arg0: i32, %arg1: memref<6xi32, #tpu.memory_space<smem>>, %arg2: memref<64x1x256xf32, #tpu.memory_space<vmem>>, %arg3: memref<128x128xf32, #tpu.memory_space<vmem>>, %arg4: memref<128x128xf32, #tpu.memory_space<vmem>>, %arg5: memref<1x128xf32, #tpu.memory_space<vmem>>, %arg6: memref<1x128xf32, #tpu.memory_space<vmem>>) attributes {dimension_semantics = [#tpu.dimension_semantics<arbitrary>], iteration_bounds = array<i64: 1>, scalar_prefetch = 1 : i64, scratch_operands = 0 : i64, tpu.core_type = #tpu.core_type<tc>, window_params = [{pipeline_mode = #tpu.pipeline_mode<synchronous>, transform_indices = @transform_0, window_bounds = array<i64: 64, 1, 256>}, {pipeline_mode = #tpu.pipeline_mode<synchronous>, transform_indices = @transform_1, window_bounds = array<i64: 128, 128>}, {pipeline_mode = #tpu.pipeline_mode<synchronous>, transform_indices = @transform_2, window_bounds = array<i64: 128, 128>}, {pipeline_mode = #tpu.pipeline_mode<synchronous>, transform_indices = @transform_3, window_bounds = array<i64: 1, 128>}, {pipeline_mode = #tpu.pipeline_mode<synchronous>, transform_indices = @transform_4, window_bounds = array<i64: 1, 128>}]} {
    %c0 = arith.constant 0 : index
    %c0_0 = arith.constant 0 : index
    %0 = vector.load %arg3[%c0, %c0_0] : memref<128x128xf32, #tpu.memory_space<vmem>>, vector<128x128xf32>
    %cst = arith.constant 0.000000e+00 : f32
    %1 = vector.broadcast %cst : f32 to vector<1x128xf32>
    %c0_i32 = arith.constant 0 : i32
    %2 = arith.index_cast %c0_i32 : i32 to index
    %3 = memref.load %arg1[%2] : memref<6xi32, #tpu.memory_space<smem>>
    %4 = arith.index_cast %3 : i32 to index
    %c0_1 = arith.constant 0 : index
    %c0_2 = arith.constant 0 : index
    %5 = vector.load %arg2[%4, %c0_1, %c0_2] : memref<64x1x256xf32, #tpu.memory_space<vmem>>, vector<1x1x256xf32>
    %6 = vector.shape_cast %5 : vector<1x1x256xf32> to vector<1x256xf32>
    %cst_3 = arith.constant dense<0.000000e+00> : vector<1x128xf32>
    %7 = tpu.matmul %1, %0, %cst_3 {dimension_numbers = #tpu.dot_dimension_numbers<[1], [0], [0], [1], [0, 0, 1, 1], [], []>} : vector<1x128xf32>, vector<128x128xf32>, vector<1x128xf32> -> vector<1x128xf32>
    %8 = vector.extract_strided_slice %6 {offsets = [0, 0], sizes = [1, 128], strides = [1, 1]} : vector<1x256xf32> to vector<1x128xf32>
    %9 = arith.addf %7, %8 : vector<1x128xf32>
    %c1_i32 = arith.constant 1 : i32
    %10 = arith.index_cast %c1_i32 : i32 to index
    %11 = memref.load %arg1[%10] : memref<6xi32, #tpu.memory_space<smem>>
    %12 = arith.index_cast %11 : i32 to index
    %c0_4 = arith.constant 0 : index
    %c0_5 = arith.constant 0 : index
    %13 = vector.load %arg2[%12, %c0_4, %c0_5] : memref<64x1x256xf32, #tpu.memory_space<vmem>>, vector<1x1x256xf32>
    %14 = vector.shape_cast %13 : vector<1x1x256xf32> to vector<1x256xf32>
    %cst_6 = arith.constant dense<0.000000e+00> : vector<1x128xf32>
    %15 = tpu.matmul %9, %0, %cst_6 {dimension_numbers = #tpu.dot_dimension_numbers<[1], [0], [0], [1], [0, 0, 1, 1], [], []>} : vector<1x128xf32>, vector<128x128xf32>, vector<1x128xf32> -> vector<1x128xf32>
    %16 = vector.extract_strided_slice %14 {offsets = [0, 0], sizes = [1, 128], strides = [1, 1]} : vector<1x256xf32> to vector<1x128xf32>
    %17 = arith.addf %15, %16 : vector<1x128xf32>
    %c2_i32 = arith.constant 2 : i32
    %18 = arith.index_cast %c2_i32 : i32 to index
    %19 = memref.load %arg1[%18] : memref<6xi32, #tpu.memory_space<smem>>
    %20 = arith.index_cast %19 : i32 to index
    %c0_7 = arith.constant 0 : index
    %c0_8 = arith.constant 0 : index
    %21 = vector.load %arg2[%20, %c0_7, %c0_8] : memref<64x1x256xf32, #tpu.memory_space<vmem>>, vector<1x1x256xf32>
    %22 = vector.shape_cast %21 : vector<1x1x256xf32> to vector<1x256xf32>
    %cst_9 = arith.constant dense<0.000000e+00> : vector<1x128xf32>
    %23 = tpu.matmul %17, %0, %cst_9 {dimension_numbers = #tpu.dot_dimension_numbers<[1], [0], [0], [1], [0, 0, 1, 1], [], []>} : vector<1x128xf32>, vector<128x128xf32>, vector<1x128xf32> -> vector<1x128xf32>
    %24 = vector.extract_strided_slice %22 {offsets = [0, 0], sizes = [1, 128], strides = [1, 1]} : vector<1x256xf32> to vector<1x128xf32>
    %25 = arith.addf %23, %24 : vector<1x128xf32>
    %c3_i32 = arith.constant 3 : i32
    %26 = arith.index_cast %c3_i32 : i32 to index
    %27 = memref.load %arg1[%26] : memref<6xi32, #tpu.memory_space<smem>>
    %28 = arith.index_cast %27 : i32 to index
    %c0_10 = arith.constant 0 : index
    %c0_11 = arith.constant 0 : index
    %29 = vector.load %arg2[%28, %c0_10, %c0_11] : memref<64x1x256xf32, #tpu.memory_space<vmem>>, vector<1x1x256xf32>
    %30 = vector.shape_cast %29 : vector<1x1x256xf32> to vector<1x256xf32>
    %cst_12 = arith.constant dense<0.000000e+00> : vector<1x128xf32>
    %31 = tpu.matmul %25, %0, %cst_12 {dimension_numbers = #tpu.dot_dimension_numbers<[1], [0], [0], [1], [0, 0, 1, 1], [], []>} : vector<1x128xf32>, vector<128x128xf32>, vector<1x128xf32> -> vector<1x128xf32>
    %32 = vector.extract_strided_slice %30 {offsets = [0, 0], sizes = [1, 128], strides = [1, 1]} : vector<1x256xf32> to vector<1x128xf32>
    %33 = arith.addf %31, %32 : vector<1x128xf32>
    %c4_i32 = arith.constant 4 : i32
    %34 = arith.index_cast %c4_i32 : i32 to index
    %35 = memref.load %arg1[%34] : memref<6xi32, #tpu.memory_space<smem>>
    %36 = arith.index_cast %35 : i32 to index
    %c0_13 = arith.constant 0 : index
    %c0_14 = arith.constant 0 : index
    %37 = vector.load %arg2[%36, %c0_13, %c0_14] : memref<64x1x256xf32, #tpu.memory_space<vmem>>, vector<1x1x256xf32>
    %38 = vector.shape_cast %37 : vector<1x1x256xf32> to vector<1x256xf32>
    %cst_15 = arith.constant dense<0.000000e+00> : vector<1x128xf32>
    %39 = tpu.matmul %33, %0, %cst_15 {dimension_numbers = #tpu.dot_dimension_numbers<[1], [0], [0], [1], [0, 0, 1, 1], [], []>} : vector<1x128xf32>, vector<128x128xf32>, vector<1x128xf32> -> vector<1x128xf32>
    %40 = vector.extract_strided_slice %38 {offsets = [0, 0], sizes = [1, 128], strides = [1, 1]} : vector<1x256xf32> to vector<1x128xf32>
    %41 = arith.addf %39, %40 : vector<1x128xf32>
    %c5_i32 = arith.constant 5 : i32
    %c5 = arith.constant 5 : index
    %42 = memref.load %arg1[%c5] : memref<6xi32, #tpu.memory_space<smem>>
    %43 = arith.index_cast %42 : i32 to index
    %c0_16 = arith.constant 0 : index
    %c0_17 = arith.constant 0 : index
    %44 = vector.load %arg2[%43, %c0_16, %c0_17] : memref<64x1x256xf32, #tpu.memory_space<vmem>>, vector<1x1x256xf32>
    %45 = vector.shape_cast %44 : vector<1x1x256xf32> to vector<1x256xf32>
    %cst_18 = arith.constant dense<0.000000e+00> : vector<1x128xf32>
    %46 = tpu.matmul %41, %0, %cst_18 {dimension_numbers = #tpu.dot_dimension_numbers<[1], [0], [0], [1], [0, 0, 1, 1], [], []>} : vector<1x128xf32>, vector<128x128xf32>, vector<1x128xf32> -> vector<1x128xf32>
    %47 = vector.extract_strided_slice %45 {offsets = [0, 0], sizes = [1, 128], strides = [1, 1]} : vector<1x256xf32> to vector<1x128xf32>
    %48 = arith.addf %46, %47 : vector<1x128xf32>
    %c0_19 = arith.constant 0 : index
    %c0_20 = arith.constant 0 : index
    %49 = vector.load %arg6[%c0_19, %c0_20] : memref<1x128xf32, #tpu.memory_space<vmem>>, vector<1x128xf32>
    tpu.vector_store %arg6[%c0_19, %c0_20], %48 {strides = array<i32>} : memref<1x128xf32, #tpu.memory_space<vmem>>, vector<1x128xf32>,
    %c0_21 = arith.constant 0 : index
    %c0_22 = arith.constant 0 : index
    %50 = vector.load %arg4[%c0_21, %c0_22] : memref<128x128xf32, #tpu.memory_space<vmem>>, vector<128x128xf32>
    %cst_23 = arith.constant dense<0.000000e+00> : vector<1x128xf32>
    %51 = tpu.matmul %41, %50, %cst_23 {dimension_numbers = #tpu.dot_dimension_numbers<[1], [0], [0], [1], [0, 0, 1, 1], [], []>} : vector<1x128xf32>, vector<128x128xf32>, vector<1x128xf32> -> vector<1x128xf32>
    %52 = vector.extract_strided_slice %45 {offsets = [0, 128], sizes = [1, 128], strides = [1, 1]} : vector<1x256xf32> to vector<1x128xf32>
    %53 = arith.addf %51, %52 : vector<1x128xf32>
    %cst_24 = arith.constant dense<0xFF800000> : vector<1xf32>
    %54 = vector.multi_reduction <maximumf>, %53, %cst_24 [1] : vector<1x128xf32> to vector<1xf32>
    %55 = vector.shape_cast %54 : vector<1xf32> to vector<1x1xf32>
    %56 = vector.broadcast %55 : vector<1x1xf32> to vector<1x128xf32>
    %57 = arith.subf %53, %56 : vector<1x128xf32>
    %58 = math.exp %57 : vector<1x128xf32>
    %cst_25 = arith.constant dense<0.000000e+00> : vector<1xf32>
    %59 = vector.multi_reduction <add>, %58, %cst_25 [1] : vector<1x128xf32> to vector<1xf32>
    %60 = vector.shape_cast %59 : vector<1xf32> to vector<1x1xf32>
    %61 = math.log %60 : vector<1x1xf32>
    %62 = vector.broadcast %61 : vector<1x1xf32> to vector<1x128xf32>
    %63 = arith.subf %57, %62 : vector<1x128xf32>
    %c0_26 = arith.constant 0 : index
    %c0_27 = arith.constant 0 : index
    %64 = vector.load %arg5[%c0_26, %c0_27] : memref<1x128xf32, #tpu.memory_space<vmem>>, vector<1x128xf32>
    tpu.vector_store %arg5[%c0_26, %c0_27], %63 {strides = array<i32>} : memref<1x128xf32, #tpu.memory_space<vmem>>, vector<1x128xf32>,
    return
  }
  func.func @transform_0(%arg0: i32, %arg1: memref<6xi32, #tpu.memory_space<smem>>) -> (i32, i32, i32) {
    %c0_i32 = arith.constant 0 : i32
    %c0_i32_0 = arith.constant 0 : i32
    %c0_i32_1 = arith.constant 0 : i32
    %c0_i32_2 = arith.constant 0 : i32
    return %c0_i32, %c0_i32_0, %c0_i32_1 : i32, i32, i32
  }
  func.func @transform_1(%arg0: i32, %arg1: memref<6xi32, #tpu.memory_space<smem>>) -> (i32, i32) {
    %c0_i32 = arith.constant 0 : i32
    %c0_i32_0 = arith.constant 0 : i32
    %c0_i32_1 = arith.constant 0 : i32
    return %c0_i32, %c0_i32_0 : i32, i32
  }
  func.func @transform_2(%arg0: i32, %arg1: memref<6xi32, #tpu.memory_space<smem>>) -> (i32, i32) {
    %c0_i32 = arith.constant 0 : i32
    %c0_i32_0 = arith.constant 0 : i32
    %c0_i32_1 = arith.constant 0 : i32
    return %c0_i32, %c0_i32_0 : i32, i32
  }
  func.func @transform_3(%arg0: i32, %arg1: memref<6xi32, #tpu.memory_space<smem>>) -> (i32, i32) {
    %c0_i32 = arith.constant 0 : i32
    %c0_i32_0 = arith.constant 0 : i32
    %c0_i32_1 = arith.constant 0 : i32
    return %c0_i32, %c0_i32_0 : i32, i32
  }
  func.func @transform_4(%arg0: i32, %arg1: memref<6xi32, #tpu.memory_space<smem>>) -> (i32, i32) {
    %c0_i32 = arith.constant 0 : i32
    %c0_i32_0 = arith.constant 0 : i32
    %c0_i32_1 = arith.constant 0 : i32
    return %c0_i32, %c0_i32_0 : i32, i32
  }
}

</mosaic_0001>

<llo_original>
// kernel: _rnn_sequence_impl.1
$region0: #{_rnn_sequence_impl.1}
  #allocation0 [shape = 'u32[]', space=smem, size = 0x4, offset = 0x4, fixed_abs, tag = 'smem constant byte address 0x4 - core index']
  #allocation1 [shape = 'u32[72,128]{1,0:T(1,128)}', space=vmem, size = 0x9000, scoped, tag = 'internal scratch']
  #allocation2 [shape = 's32[1]{0}', space=sflag, size = 0x4, scoped, tag = 'scoped memory for _rnn_sequence_impl.1']
  #allocation3 [shape = 'u8[512]{0}', space=smem, size = 0x200, scoped, tag = 'prefetched SMEM operand 0']
  %s0 = inlined_call_operand.hbm [shape: s32[6], index: 0, kind: input, shape index: {}]
  %s1 = inlined_call_operand.hbm [shape: f32[64,1,256], index: 1, kind: input, shape index: {}]
  %s2 = inlined_call_operand.hbm [shape: f32[128,128], index: 2, kind: input, shape index: {}]
  %s3 = inlined_call_operand.hbm [shape: f32[128,128], index: 3, kind: input, shape index: {}]
  %s4 = inlined_call_operand.hbm [shape: f32[1,128], index: 4, kind: output, shape index: {0}]
  %s5 = inlined_call_operand.hbm [shape: f32[1,128], index: 5, kind: output, shape index: {1}]
  %6 = xla_tuple %s4, %s5
  %s7 = sld [smem:[#allocation0]]
  $region42: #{_rnn_sequence_impl.1} parent=0
    _
  %s9 = ssub.s32 1, %s7
  %s10 = scalar_select 0, %s9, %s7
  %s12 = sshll.u32 %s0, 4
  %s13 = int_to_ptr.hbm [resolvable:$true] %s12
  %15 = dma.hbm_to_smem %s13, 16, [#allocation3], [#allocation2]
  %17 = dma.done [#allocation2], 16
  %18 = sfence
  $region1: #{_rnn_sequence_impl.1} parent=0
    #allocation4 [shape = 'u8[65536]{0}', space=vmem, size = 0x10000, scoped, tag = 'input window, operand 1, single buffered']
    #allocation5 [shape = 's32[1]{0}', space=sflag, size = 0x4, scoped, tag = 'scoped memory for _rnn_sequence_impl.1']
    #allocation6 [shape = 's32[1]{0}', space=sflag, size = 0x4, scoped, tag = 'scoped memory for _rnn_sequence_impl.1']
    #allocation7 [shape = 'u8[65536]{0}', space=vmem, size = 0x10000, scoped, tag = 'input window, operand 2, single buffered']
    #allocation8 [shape = 's32[1]{0}', space=sflag, size = 0x4, scoped, tag = 'scoped memory for _rnn_sequence_impl.1']
    #allocation9 [shape = 'u8[65536]{0}', space=vmem, size = 0x10000, scoped, tag = 'input window, operand 3, single buffered']
    #allocation10 [shape = 'u8[512]{0}', space=vmem, size = 0x400, scoped, tag = 'output window, operand 0, single buffered']
    #allocation11 [shape = 'u8[512]{0}', space=vmem, size = 0x400, scoped, tag = 'output window, operand 1, single buffered']
    #allocation12 [shape = 's32[1]{0}', space=sflag, size = 0x4, scoped, tag = 'scoped memory for _rnn_sequence_impl.1']
    %19 = vsyncpa [#allocation5], 0
    %20 = vsyncpa [#allocation8], 0
    %21 = vsyncpa [#allocation6], 0
    %22 = vsyncpa [#allocation12], 0
    // Predicated region
    $region2: #{_rnn_sequence_impl.1} parent=1 // pred_check
      _
    $region3: #{_rnn_sequence_impl.1} parent=1 // pred_check_branch
      %24 = sbr.rel (0) target = $region5
    $region4: #{_rnn_sequence_impl.1} parent=1 // pred_region
      %26 = vsyncadd [#allocation5], 0
      %s27 = sshll.u32 %s1, 4
      %s28 = int_to_ptr.hbm [resolvable:$true] %s27
      %s29 = sshll.u32 [#allocation4], 4
      %s30 = int_to_ptr.vmem [resolvable:$true] %s29
      %35 = dma.hbm_to_vmem [thread:$0]  %s28, 2048, %s30, [#allocation5], 32, 32, 2
    $region5: #{_rnn_sequence_impl.1} parent=1 // pred_fallthru
      _
    // Predicated region
    $region6: #{_rnn_sequence_impl.1} parent=1 // pred_check
      _
    $region7: #{_rnn_sequence_impl.1} parent=1 // pred_check_branch
      %37 = sbr.rel (0) target = $region9
    $region8: #{_rnn_sequence_impl.1} parent=1 // pred_region
      %39 = vsyncadd [#allocation8], 0
      %s40 = sshll.u32 %s2, 4
      %s41 = int_to_ptr.hbm [resolvable:$true] %s40
      %s42 = sshll.u32 [#allocation7], 4
      %s43 = int_to_ptr.vmem [resolvable:$true] %s42
      %48 = dma.hbm_to_vmem [thread:$0]  %s41, 2048, %s43, [#allocation8], 128, 128, 8
    $region9: #{_rnn_sequence_impl.1} parent=1 // pred_fallthru
      _
    // Predicated region
    $region10: #{_rnn_sequence_impl.1} parent=1 // pred_check
      _
    $region11: #{_rnn_sequence_impl.1} parent=1 // pred_check_branch
      %50 = sbr.rel (0) target = $region13
    $region12: #{_rnn_sequence_impl.1} parent=1 // pred_region
      %52 = vsyncadd [#allocation8], 0
      %s53 = sshll.u32 %s3, 4
      %s54 = int_to_ptr.hbm [resolvable:$true] %s53
      %s55 = sshll.u32 [#allocation9], 4
      %s56 = int_to_ptr.vmem [resolvable:$true] %s55
      %61 = dma.hbm_to_vmem [thread:$0]  %s54, 2048, %s56, [#allocation8], 128, 128, 8
    $region13: #{_rnn_sequence_impl.1} parent=1 // pred_fallthru
      _
    // Predicated region
    $region14: #{_rnn_sequence_impl.1} parent=1 // pred_check
      _
    $region15: #{_rnn_sequence_impl.1} parent=1 // pred_check_branch
      %63 = sbr.rel (0) target = $region17
    $region16: #{_rnn_sequence_impl.1} parent=1 // pred_region
      %65 = dma.done [#allocation5], 2048
    $region17: #{_rnn_sequence_impl.1} parent=1 // pred_fallthru
      _
    // Predicated region
    $region18: #{_rnn_sequence_impl.1} parent=1 // pred_check
      _
    $region19: #{_rnn_sequence_impl.1} parent=1 // pred_check_branch
      %67 = sbr.rel (0) target = $region21
    $region20: #{_rnn_sequence_impl.1} parent=1 // pred_region
      %69 = dma.done [#allocation8], 2048
    $region21: #{_rnn_sequence_impl.1} parent=1 // pred_fallthru
      _
    // Predicated region
    $region22: #{_rnn_sequence_impl.1} parent=1 // pred_check
      _
    $region23: #{_rnn_sequence_impl.1} parent=1 // pred_check_branch
      %71 = sbr.rel (0) target = $region25
    $region24: #{_rnn_sequence_impl.1} parent=1 // pred_region
      %73 = dma.done [#allocation8], 2048
    $region25: #{_rnn_sequence_impl.1} parent=1 // pred_fallthru
      _
    %v74 = vld [vmem:[#allocation7] sm:$0xff]
    %v75 = vld [vmem:[#allocation7 + $0x8] sm:$0xff]
    %v76 = vld [vmem:[#allocation7 + $0x10] sm:$0xff]
    %v77 = vld [vmem:[#allocation7 + $0x18] sm:$0xff]
    %v78 = vld [vmem:[#allocation7 + $0x20] sm:$0xff]
    %v79 = vld [vmem:[#allocation7 + $0x28] sm:$0xff]
    %v80 = vld [vmem:[#allocation7 + $0x30] sm:$0xff]
    %v81 = vld [vmem:[#allocation7 + $0x38] sm:$0xff]
    %v82 = vld [vmem:[#allocation7 + $0x40] sm:$0xff]
    %v83 = vld [vmem:[#allocation7 + $0x48] sm:$0xff]
    %v84 = vld [vmem:[#allocation7 + $0x50] sm:$0xff]
    %v85 = vld [vmem:[#allocation7 + $0x58] sm:$0xff]
    %v86 = vld [vmem:[#allocation7 + $0x60] sm:$0xff]
    %v87 = vld [vmem:[#allocation7 + $0x68] sm:$0xff]
    %v88 = vld [vmem:[#allocation7 + $0x70] sm:$0xff]
    %v89 = vld [vmem:[#allocation7 + $0x78] sm:$0xff]
    %s90 = sld [smem:[#allocation3]]
    %s91 = smul.u32 %s90, 2
    %s92 = scalar_lea.vmem [#allocation4], %s91
    %v93 = vld [vmem:[%s92] sm:$0x3]
    %94 = vmatpush.msra.mxu0 %v89
    %95 = vmatpush.msra.mxu0 %v88
    %96 = vmatpush.msra.mxu0 %v87
    %97 = vmatpush.msra.mxu0 %v86
    %98 = vmatpush.msra.mxu0 %v85
    %99 = vmatpush.msra.mxu0 %v84
    %100 = vmatpush.msra.mxu0 %v83
    %101 = vmatpush.msra.mxu0 %v82
    %102 = vmatpush.msra.mxu0 %v81
    %103 = vmatpush.msra.mxu0 %v80
    %104 = vmatpush.msra.mxu0 %v79
    %105 = vmatpush.msra.mxu0 %v78
    %106 = vmatpush.msra.mxu0 %v77
    %107 = vmatpush.msra.mxu0 %v76
    %108 = vmatpush.msra.mxu0 %v75
    %109 = vmatpush.msra.mxu0 %v74
    %110 = vmatmul.f32.gmra.mxu0 0.0
    %v111 = vpop.f32.mrf.mxu0
    %v112 = vadd.f32 %v93, %v111
    %113 = vdwg.mxu0
    %s114 = sld [smem:[#allocation3 + $0x1]]
    %s115 = smul.u32 %s114, 2
    %s116 = scalar_lea.vmem [#allocation4], %s115
    %v117 = vld [vmem:[%s116] sm:$0x3]
    %118 = vmatpush.msra.mxu0 %v89
    %119 = vmatpush.msra.mxu0 %v88
    %120 = vmatpush.msra.mxu0 %v87
    %121 = vmatpush.msra.mxu0 %v86
    %122 = vmatpush.msra.mxu0 %v85
    %123 = vmatpush.msra.mxu0 %v84
    %124 = vmatpush.msra.mxu0 %v83
    %125 = vmatpush.msra.mxu0 %v82
    %126 = vmatpush.msra.mxu0 %v81
    %127 = vmatpush.msra.mxu0 %v80
    %128 = vmatpush.msra.mxu0 %v79
    %129 = vmatpush.msra.mxu0 %v78
    %130 = vmatpush.msra.mxu0 %v77
    %131 = vmatpush.msra.mxu0 %v76
    %132 = vmatpush.msra.mxu0 %v75
    %133 = vmatpush.msra.mxu0 %v74
    %134 = vmatmul.f32.gmra.mxu0 %v112
    %v135 = vpop.f32.mrf.mxu0
    %v136 = vadd.f32 %v117, %v135
    %137 = vdwg.mxu0
    %s138 = sld [smem:[#allocation3 + $0x2]]
    %s139 = smul.u32 %s138, 2
    %s140 = scalar_lea.vmem [#allocation4], %s139
    %v141 = vld [vmem:[%s140] sm:$0x3]
    %142 = vmatpush.msra.mxu0 %v89
    %143 = vmatpush.msra.mxu0 %v88
    %144 = vmatpush.msra.mxu0 %v87
    %145 = vmatpush.msra.mxu0 %v86
    %146 = vmatpush.msra.mxu0 %v85
    %147 = vmatpush.msra.mxu0 %v84
    %148 = vmatpush.msra.mxu0 %v83
    %149 = vmatpush.msra.mxu0 %v82
    %150 = vmatpush.msra.mxu0 %v81
    %151 = vmatpush.msra.mxu0 %v80
    %152 = vmatpush.msra.mxu0 %v79
    %153 = vmatpush.msra.mxu0 %v78
    %154 = vmatpush.msra.mxu0 %v77
    %155 = vmatpush.msra.mxu0 %v76
    %156 = vmatpush.msra.mxu0 %v75
    %157 = vmatpush.msra.mxu0 %v74
    %158 = vmatmul.f32.gmra.mxu0 %v136
    %v159 = vpop.f32.mrf.mxu0
    %v160 = vadd.f32 %v141, %v159
    %161 = vdwg.mxu0
    %s162 = sld [smem:[#allocation3 + $0x3]]
    %s163 = smul.u32 %s162, 2
    %s164 = scalar_lea.vmem [#allocation4], %s163
    %v165 = vld [vmem:[%s164] sm:$0x3]
    %166 = vmatpush.msra.mxu0 %v89
    %167 = vmatpush.msra.mxu0 %v88
    %168 = vmatpush.msra.mxu0 %v87
    %169 = vmatpush.msra.mxu0 %v86
    %170 = vmatpush.msra.mxu0 %v85
    %171 = vmatpush.msra.mxu0 %v84
    %172 = vmatpush.msra.mxu0 %v83
    %173 = vmatpush.msra.mxu0 %v82
    %174 = vmatpush.msra.mxu0 %v81
    %175 = vmatpush.msra.mxu0 %v80
    %176 = vmatpush.msra.mxu0 %v79
    %177 = vmatpush.msra.mxu0 %v78
    %178 = vmatpush.msra.mxu0 %v77
    %179 = vmatpush.msra.mxu0 %v76
    %180 = vmatpush.msra.mxu0 %v75
    %181 = vmatpush.msra.mxu0 %v74
    %182 = vmatmul.f32.gmra.mxu0 %v160
    %v183 = vpop.f32.mrf.mxu0
    %v184 = vadd.f32 %v165, %v183
    %185 = vdwg.mxu0
    %s186 = sld [smem:[#allocation3 + $0x4]]
    %s187 = smul.u32 %s186, 2
    %s188 = scalar_lea.vmem [#allocation4], %s187
    %v189 = vld [vmem:[%s188] sm:$0x3]
    %190 = vmatpush.msra.mxu0 %v89
    %191 = vmatpush.msra.mxu0 %v88
    %192 = vmatpush.msra.mxu0 %v87
    %193 = vmatpush.msra.mxu0 %v86
    %194 = vmatpush.msra.mxu0 %v85
    %195 = vmatpush.msra.mxu0 %v84
    %196 = vmatpush.msra.mxu0 %v83
    %197 = vmatpush.msra.mxu0 %v82
    %198 = vmatpush.msra.mxu0 %v81
    %199 = vmatpush.msra.mxu0 %v80
    %200 = vmatpush.msra.mxu0 %v79
    %201 = vmatpush.msra.mxu0 %v78
    %202 = vmatpush.msra.mxu0 %v77
    %203 = vmatpush.msra.mxu0 %v76
    %204 = vmatpush.msra.mxu0 %v75
    %205 = vmatpush.msra.mxu0 %v74
    %206 = vmatmul.f32.gmra.mxu0 %v184
    %v207 = vpop.f32.mrf.mxu0
    %v208 = vadd.f32 %v189, %v207
    %209 = vdwg.mxu0
    %s210 = sld [smem:[#allocation3 + $0x5]]
    %s211 = smul.u32 %s210, 2
    %s212 = scalar_lea.vmem [#allocation4], %s211
    %v213 = vld [vmem:[%s212] sm:$0x3]
    %214 = vmatpush.msra.mxu0 %v89
    %215 = vmatpush.msra.mxu0 %v88
    %216 = vmatpush.msra.mxu0 %v87
    %217 = vmatpush.msra.mxu0 %v86
    %218 = vmatpush.msra.mxu0 %v85
    %219 = vmatpush.msra.mxu0 %v84
    %220 = vmatpush.msra.mxu0 %v83
    %221 = vmatpush.msra.mxu0 %v82
    %222 = vmatpush.msra.mxu0 %v81
    %223 = vmatpush.msra.mxu0 %v80
    %224 = vmatpush.msra.mxu0 %v79
    %225 = vmatpush.msra.mxu0 %v78
    %226 = vmatpush.msra.mxu0 %v77
    %227 = vmatpush.msra.mxu0 %v76
    %228 = vmatpush.msra.mxu0 %v75
    %229 = vmatpush.msra.mxu0 %v74
    %230 = vmatmul.f32.gmra.mxu0 %v208
    %v231 = vpop.f32.mrf.mxu0
    %v232 = vadd.f32 %v213, %v231
    %233 = vdwg.mxu0
    %234 = vst [vmem:[#allocation11] sm:$0x1] %v232
    %v235 = vld [vmem:[#allocation9] sm:$0xff]
    %v236 = vld [vmem:[#allocation9 + $0x8] sm:$0xff]
    %v237 = vld [vmem:[#allocation9 + $0x10] sm:$0xff]
    %v238 = vld [vmem:[#allocation9 + $0x18] sm:$0xff]
    %v239 = vld [vmem:[#allocation9 + $0x20] sm:$0xff]
    %v240 = vld [vmem:[#allocation9 + $0x28] sm:$0xff]
    %v241 = vld [vmem:[#allocation9 + $0x30] sm:$0xff]
    %v242 = vld [vmem:[#allocation9 + $0x38] sm:$0xff]
    %v243 = vld [vmem:[#allocation9 + $0x40] sm:$0xff]
    %v244 = vld [vmem:[#allocation9 + $0x48] sm:$0xff]
    %v245 = vld [vmem:[#allocation9 + $0x50] sm:$0xff]
    %v246 = vld [vmem:[#allocation9 + $0x58] sm:$0xff]
    %v247 = vld [vmem:[#allocation9 + $0x60] sm:$0xff]
    %v248 = vld [vmem:[#allocation9 + $0x68] sm:$0xff]
    %v249 = vld [vmem:[#allocation9 + $0x70] sm:$0xff]
    %v250 = vld [vmem:[#allocation9 + $0x78] sm:$0xff]
    %v252 = vperm.slane %v213, 1
    %254 = vmatpush.msra.mxu0 %v250
    %255 = vmatpush.msra.mxu0 %v249
    %256 = vmatpush.msra.mxu0 %v248
    %257 = vmatpush.msra.mxu0 %v247
    %258 = vmatpush.msra.mxu0 %v246
    %259 = vmatpush.msra.mxu0 %v245
    %260 = vmatpush.msra.mxu0 %v244
    %261 = vmatpush.msra.mxu0 %v243
    %262 = vmatpush.msra.mxu0 %v242
    %263 = vmatpush.msra.mxu0 %v241
    %264 = vmatpush.msra.mxu0 %v240
    %265 = vmatpush.msra.mxu0 %v239
    %266 = vmatpush.msra.mxu0 %v238
    %267 = vmatpush.msra.mxu0 %v237
    %268 = vmatpush.msra.mxu0 %v236
    %269 = vmatpush.msra.mxu0 %v235
    %270 = vmatmul.f32.gmra.mxu0 %v208
    %v271 = vpop.f32.mrf.mxu0
    %v272 = vadd.f32 %v252, %v271
    %273 = vdwg.mxu0
    %vm274 = vcmask 1040384
    %v275 = vsel %vm274, %v272, -inf
    %276 = vmax.xlane.f32.xlu0 %v275
    %v277 = vpop.xlane.xlu0 %276
    %v278 = vsub.f32 %v272, %v277
    %v279 = vmul.f32 %v278, 1.442695
    %v280 = vpow.pop %v279
    %v281 = vsel %vm274, %v280, 0.0
    %282 = vadd.xlane.f32.xlu0 %v281
    %v283 = vpop.xlane.xlu0 %282
    %v284 = vlog2.pop %v283
    %v285 = vmul.f32 %v284, 0.6931472
    %v286 = vsub.f32 %v278, %v285
    %287 = vst [vmem:[#allocation10] sm:$0x1] %v286
    // Predicated region
    $region26: #{_rnn_sequence_impl.1} parent=1 // pred_check
      _
    $region27: #{_rnn_sequence_impl.1} parent=1 // pred_check_branch
      %289 = sbr.rel (0) target = $region29
    $region28: #{_rnn_sequence_impl.1} parent=1 // pred_region
      %291 = vsyncadd [#allocation6], 0
      %s293 = sshll.u32 [#allocation10], 4
      %s294 = int_to_ptr.vmem [resolvable:$true] %s293
      %s295 = sshll.u32 %s4, 4
      %s296 = int_to_ptr.hbm [resolvable:$true] %s295
      %298 = dma.vmem_to_hbm [thread:$0]  %s294, 16, %s296, [#allocation6]
    $region29: #{_rnn_sequence_impl.1} parent=1 // pred_fallthru
      _
    // Predicated region
    $region30: #{_rnn_sequence_impl.1} parent=1 // pred_check
      _
    $region31: #{_rnn_sequence_impl.1} parent=1 // pred_check_branch
      %300 = sbr.rel (0) target = $region33
    $region32: #{_rnn_sequence_impl.1} parent=1 // pred_region
      %302 = vsyncadd [#allocation12], 0
      %s304 = sshll.u32 [#allocation11], 4
      %s305 = int_to_ptr.vmem [resolvable:$true] %s304
      %s306 = sshll.u32 %s5, 4
      %s307 = int_to_ptr.hbm [resolvable:$true] %s306
      %309 = dma.vmem_to_hbm [thread:$0]  %s305, 16, %s307, [#allocation12]
    $region33: #{_rnn_sequence_impl.1} parent=1 // pred_fallthru
      _
    // Predicated region
    $region34: #{_rnn_sequence_impl.1} parent=1 // pred_check
      _
    $region35: #{_rnn_sequence_impl.1} parent=1 // pred_check_branch
      %311 = sbr.rel (0) target = $region37
    $region36: #{_rnn_sequence_impl.1} parent=1 // pred_region
      %313 = dma.done [#allocation6], 16
    $region37: #{_rnn_sequence_impl.1} parent=1 // pred_fallthru
      _
    // Predicated region
    $region38: #{_rnn_sequence_impl.1} parent=1 // pred_check
      _
    $region39: #{_rnn_sequence_impl.1} parent=1 // pred_check_branch
      %315 = sbr.rel (0) target = $region41
    $region40: #{_rnn_sequence_impl.1} parent=1 // pred_region
      %317 = dma.done [#allocation12], 16
    $region41: #{_rnn_sequence_impl.1} parent=1 // pred_fallthru
      _
    %318 = vsyncpa [#allocation5], 1
    %319 = vsyncpa [#allocation8], 1
    %320 = vsyncpa [#allocation6], 1
    %321 = vsyncpa [#allocation12], 1

</llo_original>
